<compile_context>
chip_gen: v5e
topology: v5e:2x2
jax: 0.10.0
libtpu: 0.0.40
codegen_flags: <defaults>
</compile_context>

<pallas_src>
import math

import jax
import jax.numpy as jnp
from jax import lax
from jax.experimental import pallas as pl
from jax.experimental.pallas import tpu as pltpu


def _pick_tile(n, candidates=(256, 128, 64, 32, 16, 8)):
    """Largest MXU-friendly tile (capped at 256 for VMEM headroom) dividing n."""
    for t in candidates:
        if n % t == 0:
            return t
    return n


def _vmem_limit_bytes():
    """Explicit scoped-VMEM limit with headroom under the physical capacity."""
    try:
        cap = pltpu.get_tpu_info().vmem_capacity_bytes
    except Exception:
        cap = 64 * 1024 * 1024
    return min(int(cap * 0.85), 64 * 1024 * 1024)


def _flash_kernel(q_ref, k_ref, v_ref, o_ref, m_s, l_s, acc_s):
    """Pure flash attention for one (batch, head, q-tile) over the kv sweep.

    Blocks:
      q_ref (1, 1, TN, dh) bf16 (scale pre-folded into the Q projection)
      k_ref (1, 1, TM, dh) bf16    v_ref (1, 1, TM, dh) bf16
      o_ref (1, 1, TN, dh) f32   (resident across the kv axis)
    Scratch: m_s/l_s (TN, 1) f32, acc_s (TN, dh) f32.
    """
    kv = pl.program_id(3)
    n_kv = pl.num_programs(3)

    @pl.when(kv == 0)
    def _init():
        m_s[...] = jnp.full(m_s.shape, -jnp.inf, dtype=m_s.dtype)
        l_s[...] = jnp.zeros(l_s.shape, dtype=l_s.dtype)
        acc_s[...] = jnp.zeros(acc_s.shape, dtype=acc_s.dtype)

    q = q_ref[0, 0]                                             # (TN, dh) bf16
    k = k_ref[0, 0]                                             # (TM, dh) bf16
    v = v_ref[0, 0]                                             # (TM, dh) bf16

    # Scores: k "transpose" folded into the contraction (no explicit k.T).
    s = lax.dot_general(q, k, (((1,), (1,)), ((), ())),
                        preferred_element_type=jnp.float32)     # (TN, TM) f32

    # Online softmax update; m/l/acc stay f32, exp runs on the bf16 EUP path.
    m_prev = m_s[...]
    m_new = jnp.maximum(m_prev, jnp.max(s, axis=-1, keepdims=True))
    alpha = jnp.exp(m_prev - m_new)                             # (TN, 1) f32
    p = jnp.exp((s - m_new).astype(jnp.bfloat16))               # (TN, TM) bf16
    l_s[...] = alpha * l_s[...] + jnp.sum(p.astype(jnp.float32),
                                          axis=-1, keepdims=True)
    pv = jnp.dot(p, v, preferred_element_type=jnp.float32)      # (TN, dh) f32
    acc_s[...] = alpha * acc_s[...] + pv
    m_s[...] = m_new

    @pl.when(kv == n_kv - 1)
    def _finalize():
        o_ref[0, 0] = (acc_s[...] * pl.reciprocal(l_s[...], approx=True)
                       ).astype(o_ref.dtype)


def memory_efficient_cross_attention(x, context, params, *, heads, dim_head,
                                     tile_n=None, tile_m=None):
    """x: (B, N, query_dim); context: (B, M, context_dim) or None (self-attn)."""
    if context is None:
        context = x
    B, N, Dq = x.shape
    Bc, M, Dc = context.shape
    assert Bc == B
    inner = heads * dim_head

    wq, wk, wv, wo, bo = (params["wq"], params["wk"], params["wv"],
                          params["wo"], params["bo"])
    assert wq.shape == (Dq, inner) and wk.shape == (Dc, inner)
    assert wv.shape == (Dc, inner) and wo.shape == (inner, Dq)

    scale = 1.0 / math.sqrt(dim_head)

    # --- Projections in the wrapper: one wide, lane-dense bf16 matmul each. ---
    # (Feedback: do NOT redo K/V projection per q-tile; fill the full MXU width
    # with the H*dh output lanes instead of per-head dh-wide dots.)
    wq_b = (wq * scale).astype(jnp.bfloat16)      # fold 1/sqrt(dh) into Q weights
    wk_b = wk.astype(jnp.bfloat16)
    wv_b = wv.astype(jnp.bfloat16)
    xb = x.astype(jnp.bfloat16)
    cb = context.astype(jnp.bfloat16)

    q = jnp.einsum("bnd,dk->bnk", xb, wq_b,
                   preferred_element_type=jnp.float32).astype(jnp.bfloat16)
    k = jnp.einsum("bmd,dk->bmk", cb, wk_b,
                   preferred_element_type=jnp.float32).astype(jnp.bfloat16)
    v = jnp.einsum("bmd,dk->bmk", cb, wv_b,
                   preferred_element_type=jnp.float32).astype(jnp.bfloat16)

    # Head-major layout for the kernel: (B, H, seq, dh), bf16 (halved DMA bytes).
    qh = q.reshape(B, N, heads, dim_head).transpose(0, 2, 1, 3)
    kh = k.reshape(B, M, heads, dim_head).transpose(0, 2, 1, 3)
    vh = v.reshape(B, M, heads, dim_head).transpose(0, 2, 1, 3)

    tn = tile_n if tile_n is not None else _pick_tile(N)
    tm = tile_m if tile_m is not None else _pick_tile(M)
    assert N % tn == 0 and M % tm == 0
    grid = (B, heads, N // tn, M // tm)

    o = pl.pallas_call(
        _flash_kernel,
        out_shape=jax.ShapeDtypeStruct((B, heads, N, dim_head), jnp.float32),
        grid_spec=pltpu.PrefetchScalarGridSpec(
            num_scalar_prefetch=0,
            grid=grid,
            in_specs=[
                pl.BlockSpec((1, 1, tn, dim_head), lambda b, h, i, j: (b, h, i, 0)),
                pl.BlockSpec((1, 1, tm, dim_head), lambda b, h, i, j: (b, h, j, 0)),
                pl.BlockSpec((1, 1, tm, dim_head), lambda b, h, i, j: (b, h, j, 0)),
            ],
            out_specs=pl.BlockSpec((1, 1, tn, dim_head),
                                   lambda b, h, i, j: (b, h, i, 0)),
            scratch_shapes=[
                pltpu.VMEM((tn, 1), jnp.float32),          # running max
                pltpu.VMEM((tn, 1), jnp.float32),          # running sum
                pltpu.VMEM((tn, dim_head), jnp.float32),   # accumulator
            ],
        ),
        compiler_params=pltpu.CompilerParams(
            dimension_semantics=("parallel", "parallel", "parallel", "arbitrary"),
            vmem_limit_bytes=_vmem_limit_bytes()),
    )(qh, kh, vh)

    # (B, H, N, dh) -> (B, N, H*dh); this layout change folds into the following
    # full-depth (K = H*dh) output-projection matmul, which also adds the bias.
    o = o.transpose(0, 2, 1, 3).reshape(B, N, inner)
    out = jnp.einsum("bnk,kd->bnd", o.astype(jnp.bfloat16),
                     wo.astype(jnp.bfloat16),
                     preferred_element_type=jnp.float32) + bo
    return out.astype(x.dtype)


def _reference(x, context, params, *, heads, dim_head):
    """Pure-JAX reference mirroring the PyTorch forward (with_ip=False)."""
    if context is None:
        context = x
    B, N, Dq = x.shape
    q = x @ params["wq"]
    k = context @ params["wk"]
    v = context @ params["wv"]

    def split_heads(t):
        b, n, _ = t.shape
        return t.reshape(b, n, heads, dim_head).transpose(0, 2, 1, 3)

    qh, kh, vh = map(split_heads, (q, k, v))                 # (B, H, n, dh)
    scale = 1.0 / math.sqrt(dim_head)
    s = jnp.einsum("bhnd,bhmd->bhnm", qh, kh) * scale
    p = jax.nn.softmax(s, axis=-1)
    o = jnp.einsum("bhnm,bhmd->bhnd", p, vh)
    o = o.transpose(0, 2, 1, 3).reshape(B, N, heads * dim_head)
    return o @ params["wo"] + params["bo"]


def _make_params(key, query_dim, context_dim, heads, dim_head):
    inner = heads * dim_head
    kq, kk, kv, ko, kb = jax.random.split(key, 5)
    return {
        "wq": 0.1 * jax.random.normal(kq, (query_dim, inner), jnp.float32),
        "wk": 0.1 * jax.random.normal(kk, (context_dim, inner), jnp.float32),
        "wv": 0.1 * jax.random.normal(kv, (context_dim, inner), jnp.float32),
        "wo": 0.1 * jax.random.normal(ko, (inner, query_dim), jnp.float32),
        "bo": 0.1 * jax.random.normal(kb, (query_dim,), jnp.float32),
    }


if __name__ == "__main__":
    key = jax.random.PRNGKey(0)
    k_self, k_cross, kx1, kx2, kc2 = jax.random.split(key, 5)

    B, N, query_dim = 2, 16, 32
    heads, dim_head = 4, 8

    # --- Test 1: self-attention; forced small tiles so the grid is
    #             (B, H, 2, 2) and the online-softmax path is exercised. ---
    params1 = _make_params(k_self, query_dim, query_dim, heads, dim_head)
    x1 = jax.random.normal(kx1, (B, N, query_dim), dtype=jnp.float32)

    out1 = memory_efficient_cross_attention(
        x1, None, params1, heads=heads, dim_head=dim_head, tile_n=8, tile_m=8)
    out1 = jax.block_until_ready(out1)
    ref1 = _reference(x1, None, params1, heads=heads, dim_head=dim_head)
    assert out1.shape == (B, N, query_dim)
    assert jnp.allclose(out1, ref1, rtol=3e-2, atol=3e-2), (
        "self-attn mismatch, max err "
        f"{float(jnp.max(jnp.abs(out1 - ref1)))}")

    # --- Test 2: cross-attention (context_dim != query_dim), auto tiles. ---
    M, context_dim = 8, 24
    params2 = _make_params(k_cross, query_dim, context_dim, heads, dim_head)
    x2 = jax.random.normal(kx2, (B, N, query_dim), dtype=jnp.float32)
    ctx2 = jax.random.normal(kc2, (B, M, context_dim), dtype=jnp.float32)

    out2 = memory_efficient_cross_attention(
        x2, ctx2, params2, heads=heads, dim_head=dim_head)
    out2 = jax.block_until_ready(out2)
    ref2 = _reference(x2, ctx2, params2, heads=heads, dim_head=dim_head)
    assert out2.shape == (B, N, query_dim)
    assert jnp.allclose(out2, ref2, rtol=3e-2, atol=3e-2), (
        "cross-attn mismatch, max err "
        f"{float(jnp.max(jnp.abs(out2 - ref2)))}")

    print("KERNEL_OK")
</pallas_src>

<mosaic_0001>
module attributes {stable_mosaic.version = 11 : i64} {
  func.func @_flash_kernel(%arg0: i32, %arg1: i32, %arg2: i32, %arg3: i32, %arg4: memref<1x1x8x8xbf16, #tpu.memory_space<vmem>>, %arg5: memref<1x1x8x8xbf16, #tpu.memory_space<vmem>>, %arg6: memref<1x1x8x8xbf16, #tpu.memory_space<vmem>>, %arg7: memref<1x1x8x8xf32, #tpu.memory_space<vmem>>, %arg8: memref<8x1xf32, #tpu.memory_space<vmem>>, %arg9: memref<8x1xf32, #tpu.memory_space<vmem>>, %arg10: memref<8x8xf32, #tpu.memory_space<vmem>>) attributes {dimension_semantics = [#tpu.dimension_semantics<parallel>, #tpu.dimension_semantics<parallel>, #tpu.dimension_semantics<parallel>, #tpu.dimension_semantics<arbitrary>], iteration_bounds = array<i64: 2, 4, 2, 2>, scalar_prefetch = 0 : i64, scratch_operands = 3 : i64, tpu.core_type = #tpu.core_type<tc>, window_params = [{transform_indices = @transform_0, window_bounds = array<i64: 1, 1, 8, 8>}, {transform_indices = @transform_1, window_bounds = array<i64: 1, 1, 8, 8>}, {transform_indices = @transform_2, window_bounds = array<i64: 1, 1, 8, 8>}, {transform_indices = @transform_3, window_bounds = array<i64: 1, 1, 8, 8>}]} {
    %c0_i32 = arith.constant 0 : i32
    %0 = arith.cmpi eq, %arg3, %c0_i32 : i32
    %1 = arith.extui %0 : i1 to i32
    %c0_i32_0 = arith.constant 0 : i32
    %2 = arith.cmpi ne, %1, %c0_i32_0 : i32
    scf.if %2 {
      %cst_28 = arith.constant 0xFF800000 : f32
      %37 = vector.broadcast %cst_28 : f32 to vector<8x1xf32>
      %c0_29 = arith.constant 0 : index
      %c0_30 = arith.constant 0 : index
      %38 = vector.load %arg8[%c0_29, %c0_30] : memref<8x1xf32, #tpu.memory_space<vmem>>, vector<8x1xf32>
      tpu.vector_store %arg8[%c0_29, %c0_30], %37 {strides = array<i32>} : memref<8x1xf32, #tpu.memory_space<vmem>>, vector<8x1xf32>,
      %cst_31 = arith.constant 0.000000e+00 : f32
      %39 = vector.broadcast %cst_31 : f32 to vector<8x1xf32>
      %c0_32 = arith.constant 0 : index
      %c0_33 = arith.constant 0 : index
      %40 = vector.load %arg9[%c0_32, %c0_33] : memref<8x1xf32, #tpu.memory_space<vmem>>, vector<8x1xf32>
      tpu.vector_store %arg9[%c0_32, %c0_33], %39 {strides = array<i32>} : memref<8x1xf32, #tpu.memory_space<vmem>>, vector<8x1xf32>,
      %cst_34 = arith.constant 0.000000e+00 : f32
      %41 = vector.broadcast %cst_34 : f32 to vector<8x8xf32>
      %c0_35 = arith.constant 0 : index
      %c0_36 = arith.constant 0 : index
      %42 = vector.load %arg10[%c0_35, %c0_36] : memref<8x8xf32, #tpu.memory_space<vmem>>, vector<8x8xf32>
      tpu.vector_store %arg10[%c0_35, %c0_36], %41 {strides = array<i32>} : memref<8x8xf32, #tpu.memory_space<vmem>>, vector<8x8xf32>,
    } else {
    }
    %c0 = arith.constant 0 : index
    %c0_1 = arith.constant 0 : index
    %c0_2 = arith.constant 0 : index
    %c0_3 = arith.constant 0 : index
    %3 = vector.load %arg4[%c0, %c0_1, %c0_2, %c0_3] : memref<1x1x8x8xbf16, #tpu.memory_space<vmem>>, vector<1x1x8x8xbf16>
    %4 = vector.shape_cast %3 : vector<1x1x8x8xbf16> to vector<8x8xbf16>
    %c0_4 = arith.constant 0 : index
    %c0_5 = arith.constant 0 : index
    %c0_6 = arith.constant 0 : index
    %c0_7 = arith.constant 0 : index
    %5 = vector.load %arg5[%c0_4, %c0_5, %c0_6, %c0_7] : memref<1x1x8x8xbf16, #tpu.memory_space<vmem>>, vector<1x1x8x8xbf16>
    %6 = vector.shape_cast %5 : vector<1x1x8x8xbf16> to vector<8x8xbf16>
    %c0_8 = arith.constant 0 : index
    %c0_9 = arith.constant 0 : index
    %c0_10 = arith.constant 0 : index
    %c0_11 = arith.constant 0 : index
    %7 = vector.load %arg6[%c0_8, %c0_9, %c0_10, %c0_11] : memref<1x1x8x8xbf16, #tpu.memory_space<vmem>>, vector<1x1x8x8xbf16>
    %8 = vector.shape_cast %7 : vector<1x1x8x8xbf16> to vector<8x8xbf16>
    %cst = arith.constant dense<0.000000e+00> : vector<8x8xf32>
    %9 = tpu.matmul %4, %6, %cst {dimension_numbers = #tpu.dot_dimension_numbers<[1], [1], [0], [0], [0, 0, 1, 0], [], []>} : vector<8x8xbf16>, vector<8x8xbf16>, vector<8x8xf32> -> vector<8x8xf32>
    %c0_12 = arith.constant 0 : index
    %c0_13 = arith.constant 0 : index
    %10 = vector.load %arg8[%c0_12, %c0_13] : memref<8x1xf32, #tpu.memory_space<vmem>>, vector<8x1xf32>
    %cst_14 = arith.constant dense<0xFF800000> : vector<8xf32>
    %11 = vector.multi_reduction <maximumf>, %9, %cst_14 [1] : vector<8x8xf32> to vector<8xf32>
    %12 = vector.shape_cast %11 : vector<8xf32> to vector<8x1xf32>
    %13 = arith.maximumf %10, %12 : vector<8x1xf32>
    %14 = arith.subf %10, %13 : vector<8x1xf32>
    %15 = math.exp %14 : vector<8x1xf32>
    %16 = vector.broadcast %13 : vector<8x1xf32> to vector<8x8xf32>
    %17 = arith.subf %9, %16 : vector<8x8xf32>
    %18 = arith.truncf %17 : vector<8x8xf32> to vector<8x8xbf16>
    %19 = math.exp %18 : vector<8x8xbf16>
    %c0_15 = arith.constant 0 : index
    %c0_16 = arith.constant 0 : index
    %20 = vector.load %arg9[%c0_15, %c0_16] : memref<8x1xf32, #tpu.memory_space<vmem>>, vector<8x1xf32>
    %21 = arith.mulf %15, %20 : vector<8x1xf32>
    %22 = arith.extf %19 : vector<8x8xbf16> to vector<8x8xf32>
    %cst_17 = arith.constant dense<0.000000e+00> : vector<8xf32>
    %23 = vector.multi_reduction <add>, %22, %cst_17 [1] : vector<8x8xf32> to vector<8xf32>
    %24 = vector.shape_cast %23 : vector<8xf32> to vector<8x1xf32>
    %25 = arith.addf %21, %24 : vector<8x1xf32>
    %c0_18 = arith.constant 0 : index
    %c0_19 = arith.constant 0 : index
    %26 = vector.load %arg9[%c0_18, %c0_19] : memref<8x1xf32, #tpu.memory_space<vmem>>, vector<8x1xf32>
    tpu.vector_store %arg9[%c0_18, %c0_19], %25 {strides = array<i32>} : memref<8x1xf32, #tpu.memory_space<vmem>>, vector<8x1xf32>,
    %cst_20 = arith.constant dense<0.000000e+00> : vector<8x8xf32>
    %27 = tpu.matmul %19, %8, %cst_20 {dimension_numbers = #tpu.dot_dimension_numbers<[1], [0], [0], [1], [0, 0, 1, 1], [], []>} : vector<8x8xbf16>, vector<8x8xbf16>, vector<8x8xf32> -> vector<8x8xf32>
    %c0_21 = arith.constant 0 : index
    %c0_22 = arith.constant 0 : index
    %28 = vector.load %arg10[%c0_21, %c0_22] : memref<8x8xf32, #tpu.memory_space<vmem>>, vector<8x8xf32>
    %29 = vector.broadcast %15 : vector<8x1xf32> to vector<8x8xf32>
    %30 = arith.mulf %29, %28 : vector<8x8xf32>
    %31 = arith.addf %30, %27 : vector<8x8xf32>
    %c0_23 = arith.constant 0 : index
    %c0_24 = arith.constant 0 : index
    %32 = vector.load %arg10[%c0_23, %c0_24] : memref<8x8xf32, #tpu.memory_space<vmem>>, vector<8x8xf32>
    tpu.vector_store %arg10[%c0_23, %c0_24], %31 {strides = array<i32>} : memref<8x8xf32, #tpu.memory_space<vmem>>, vector<8x8xf32>,
    %c0_25 = arith.constant 0 : index
    %c0_26 = arith.constant 0 : index
    %33 = vector.load %arg8[%c0_25, %c0_26] : memref<8x1xf32, #tpu.memory_space<vmem>>, vector<8x1xf32>
    tpu.vector_store %arg8[%c0_25, %c0_26], %13 {strides = array<i32>} : memref<8x1xf32, #tpu.memory_space<vmem>>, vector<8x1xf32>,
    %c1_i32 = arith.constant 1 : i32
    %34 = arith.cmpi eq, %arg3, %c1_i32 : i32
    %35 = arith.extui %34 : i1 to i32
    %c0_i32_27 = arith.constant 0 : i32
    %36 = arith.cmpi ne, %35, %c0_i32_27 : i32
    scf.if %36 {
      %c0_28 = arith.constant 0 : index
      %c0_29 = arith.constant 0 : index
      %37 = vector.load %arg10[%c0_28, %c0_29] : memref<8x8xf32, #tpu.memory_space<vmem>>, vector<8x8xf32>
      %c0_30 = arith.constant 0 : index
      %c0_31 = arith.constant 0 : index
      %38 = vector.load %arg9[%c0_30, %c0_31] : memref<8x1xf32, #tpu.memory_space<vmem>>, vector<8x1xf32>
      %39 = tpu.reciprocal %38 {approx = true} : vector<8x1xf32> -> vector<8x1xf32>
      %40 = vector.broadcast %39 : vector<8x1xf32> to vector<8x8xf32>
      %41 = arith.mulf %37, %40 : vector<8x8xf32>
      %c0_32 = arith.constant 0 : index
      %c0_33 = arith.constant 0 : index
      %c0_34 = arith.constant 0 : index
      %c0_35 = arith.constant 0 : index
      %42 = vector.load %arg7[%c0_32, %c0_33, %c0_34, %c0_35] : memref<1x1x8x8xf32, #tpu.memory_space<vmem>>, vector<1x1x8x8xf32>
      %43 = vector.shape_cast %42 : vector<1x1x8x8xf32> to vector<8x8xf32>
      %44 = vector.shape_cast %41 : vector<8x8xf32> to vector<1x1x8x8xf32>
      tpu.vector_store %arg7[%c0_32, %c0_33, %c0_34, %c0_35], %44 {strides = array<i32>} : memref<1x1x8x8xf32, #tpu.memory_space<vmem>>, vector<1x1x8x8xf32>,
    } else {
    }
    return
  }
  func.func @transform_0(%arg0: i32, %arg1: i32, %arg2: i32, %arg3: i32) -> (i32, i32, i32, i32) {
    %c0_i32 = arith.constant 0 : i32
    %c0_i32_0 = arith.constant 0 : i32
    return %arg0, %arg1, %arg2, %c0_i32 : i32, i32, i32, i32
  }
  func.func @transform_1(%arg0: i32, %arg1: i32, %arg2: i32, %arg3: i32) -> (i32, i32, i32, i32) {
    %c0_i32 = arith.constant 0 : i32
    %c0_i32_0 = arith.constant 0 : i32
    return %arg0, %arg1, %arg3, %c0_i32 : i32, i32, i32, i32
  }
  func.func @transform_2(%arg0: i32, %arg1: i32, %arg2: i32, %arg3: i32) -> (i32, i32, i32, i32) {
    %c0_i32 = arith.constant 0 : i32
    %c0_i32_0 = arith.constant 0 : i32
    return %arg0, %arg1, %arg3, %c0_i32 : i32, i32, i32, i32
  }
  func.func @transform_3(%arg0: i32, %arg1: i32, %arg2: i32, %arg3: i32) -> (i32, i32, i32, i32) {
    %c0_i32 = arith.constant 0 : i32
    %c0_i32_0 = arith.constant 0 : i32
    return %arg0, %arg1, %arg2, %c0_i32 : i32, i32, i32, i32
  }
}

</mosaic_0001>

<llo_original>
// kernel: tpu_custom_call.1
$region0: #{tpu_custom_call.1}
  #allocation0 [shape = 'u32[]', space=smem, size = 0x4, offset = 0x4, fixed_abs, tag = 'smem constant byte address 0x4 - core index']
  #allocation1 [shape = 'u32[72,128]{1,0:T(1,128)}', space=vmem, size = 0x9000, scoped, tag = 'internal scratch']
  #allocation2 [shape = 'f32[8,1]{1,0:T(8,128)}', space=vmem, size = 0x1000, scoped, tag = 'scratch operand']
  #allocation3 [shape = 'f32[8,1]{1,0:T(8,128)}', space=vmem, size = 0x1000, scoped, tag = 'scratch operand']
  #allocation4 [shape = 'f32[8,8]{1,0:T(8,128)}', space=vmem, size = 0x1000, scoped, tag = 'scratch operand']
  %s0 = inlined_call_operand.vmem [shape: bf16[2,4,16,8], index: 0, kind: input, shape index: {}]
  %s1 = inlined_call_operand.vmem [shape: bf16[2,4,16,8], index: 1, kind: input, shape index: {}]
  %s2 = inlined_call_operand.vmem [shape: bf16[2,4,16,8], index: 2, kind: input, shape index: {}]
  %s3 = inlined_call_operand.vmem [shape: f32[2,4,16,8], index: 3, kind: output, shape index: {}]
  %s4 = sld [smem:[#allocation0]]
  $region53: #{tpu_custom_call.1} parent=0
    _
  %s6 = ssub.s32 1, %s4
  %s7 = scalar_select 0, %s6, %s4
  loop: start=0, step=1, limit=34
  $region2: #{tpu_custom_call.1} parent=0 // loop_pre_header
    _
  $region3: #{tpu_custom_call.1} parent=0 // loop_header
    %s9 = sphi 0, %s13
    %p10 = scmp.ge.s32.totalorder %s9, 34
    %s16 = sphi 0, %s42
    %s17 = sphi 0, %s38
    %s18 = sphi 0, %s34
    %s19 = sphi 0, %s30
    %s20 = sphi 0, %s16
    %s21 = sphi 0, %s17
    %s22 = sphi 0, %s18
    %s23 = sphi 0, %s19
    %s24 = sphi 0, %s20
    %s25 = sphi 0, %s21
    %s26 = sphi 0, %s22
    %s27 = sphi 0, %s23
    %s49 = sphi 0, %s51
    %s52 = sphi 0, %s49
    %s53 = sphi 0, %s52
    %s69 = sphi 0, %s53
    %s79 = sphi 0, %s81
    %s82 = sphi 0, %s79
    %s83 = sphi 0, %s82
    %s99 = sphi 0, %s83
    %s109 = sphi 0, %s111
    %s112 = sphi 0, %s109
    %s113 = sphi 0, %s112
    %s129 = sphi 0, %s113
    %s139 = sphi 0, %s141
    %s142 = sphi 0, %s139
    %s143 = sphi 0, %s142
    %s159 = sphi 0, %s143
  $region4: #{tpu_custom_call.1} parent=0 // loop_header_branch
    %12 = sbr.rel (%p10) target = $region8
  $region5: #{tpu_custom_call.1} parent=0 // loop_body
    %s14 = ssub.s32 %s9, 1
    %s15 = ssub.s32 %s9, 2
    %s28 = sadd.s32 1, %s19
    %p29 = scmp.ge.s32.totalorder %s28, 2
    %s30 = scalar_select %p29, 0, %s28
    %s31 = sadd.s32 1, %s18
    %s32 = scalar_select %p29, %s31, %s18
    %p33 = scmp.ge.s32.totalorder %s32, 2
    %s34 = scalar_select %p33, 0, %s32
    %s35 = sadd.s32 1, %s17
    %s36 = scalar_select %p33, %s35, %s17
    %p37 = scmp.ge.s32.totalorder %s36, 4
    %s38 = scalar_select %p37, 0, %s36
    %s39 = sadd.s32 1, %s16
    %s40 = scalar_select %p37, %s39, %s16
    %p41 = scmp.ge.s32.totalorder %s40, 2
    %s42 = scalar_select %p41, 0, %s40
    %s43 = ssub.s32 %s16, %s42
    %s44 = ssub.s32 %s17, %s38
    %s45 = sor.u32 %s43, %s44
    %s46 = ssub.s32 %s18, %s34
    %s47 = sor.u32 %s45, %s46
    %p48 = scmp.eq.s32.totalorder %s47, 0
    %s50 = sadd.s32 %s49, 1
    %s51 = scalar_select %p48, %s49, %s50
    %p54 = pneg %p48
    %p55 = scmp.eq.s32.totalorder %s9, 31
    %p56 = por %p54, %p55
    %p57 = scmp.ne.s32.totalorder %s49, %s52
    %p58 = scmp.eq.s32.totalorder %s9, 0
    %p59 = por %p57, %p58
    %p60 = scmp.ne.s32.totalorder %s49, %s52
    %p61 = scmp.eq.s32.totalorder %s14, 31
    %p62 = por %p60, %p61
    %p63 = scmp.ne.s32.totalorder %s52, %s53
    %p64 = scmp.eq.s32.totalorder %s14, 0
    %p65 = por %p63, %p64
    %p66 = scmp.ne.s32.totalorder %s52, %s53
    %p67 = scmp.eq.s32.totalorder %s15, 31
    %p68 = por %p66, %p67
    %p70 = scmp.ne.s32.totalorder %s53, %s69
    %p71 = scmp.eq.s32.totalorder %s15, 0
    %p72 = por %p70, %p71
    %s73 = ssub.s32 %s16, %s42
    %s74 = ssub.s32 %s17, %s38
    %s75 = sor.u32 %s73, %s74
    %s76 = ssub.s32 %s19, %s30
    %s77 = sor.u32 %s75, %s76
    %p78 = scmp.eq.s32.totalorder %s77, 0
    %s80 = sadd.s32 %s79, 1
    %s81 = scalar_select %p78, %s79, %s80
    %p84 = pneg %p78
    %p85 = scmp.eq.s32.totalorder %s9, 31
    %p86 = por %p84, %p85
    %p87 = scmp.ne.s32.totalorder %s79, %s82
    %p88 = scmp.eq.s32.totalorder %s9, 0
    %p89 = por %p87, %p88
    %p90 = scmp.ne.s32.totalorder %s79, %s82
    %p91 = scmp.eq.s32.totalorder %s14, 31
    %p92 = por %p90, %p91
    %p93 = scmp.ne.s32.totalorder %s82, %s83
    %p94 = scmp.eq.s32.totalorder %s14, 0
    %p95 = por %p93, %p94
    %p96 = scmp.ne.s32.totalorder %s82, %s83
    %p97 = scmp.eq.s32.totalorder %s15, 31
    %p98 = por %p96, %p97
    %p100 = scmp.ne.s32.totalorder %s83, %s99
    %p101 = scmp.eq.s32.totalorder %s15, 0
    %p102 = por %p100, %p101
    %s103 = ssub.s32 %s16, %s42
    %s104 = ssub.s32 %s17, %s38
    %s105 = sor.u32 %s103, %s104
    %s106 = ssub.s32 %s19, %s30
    %s107 = sor.u32 %s105, %s106
    %p108 = scmp.eq.s32.totalorder %s107, 0
    %s110 = sadd.s32 %s109, 1
    %s111 = scalar_select %p108, %s109, %s110
    %p114 = pneg %p108
    %p115 = scmp.eq.s32.totalorder %s9, 31
    %p116 = por %p114, %p115
    %p117 = scmp.ne.s32.totalorder %s109, %s112
    %p118 = scmp.eq.s32.totalorder %s9, 0
    %p119 = por %p117, %p118
    %p120 = scmp.ne.s32.totalorder %s109, %s112
    %p121 = scmp.eq.s32.totalorder %s14, 31
    %p122 = por %p120, %p121
    %p123 = scmp.ne.s32.totalorder %s112, %s113
    %p124 = scmp.eq.s32.totalorder %s14, 0
    %p125 = por %p123, %p124
    %p126 = scmp.ne.s32.totalorder %s112, %s113
    %p127 = scmp.eq.s32.totalorder %s15, 31
    %p128 = por %p126, %p127
    %p130 = scmp.ne.s32.totalorder %s113, %s129
    %p131 = scmp.eq.s32.totalorder %s15, 0
    %p132 = por %p130, %p131
    %s133 = ssub.s32 %s16, %s42
    %s134 = ssub.s32 %s17, %s38
    %s135 = sor.u32 %s133, %s134
    %s136 = ssub.s32 %s18, %s34
    %s137 = sor.u32 %s135, %s136
    %p138 = scmp.eq.s32.totalorder %s137, 0
    %s140 = sadd.s32 %s139, 1
    %s141 = scalar_select %p138, %s139, %s140
    %p144 = pneg %p138
    %p145 = scmp.eq.s32.totalorder %s9, 31
    %p146 = por %p144, %p145
    %p147 = scmp.ne.s32.totalorder %s139, %s142
    %p148 = scmp.eq.s32.totalorder %s9, 0
    %p149 = por %p147, %p148
    %p150 = scmp.ne.s32.totalorder %s139, %s142
    %p151 = scmp.eq.s32.totalorder %s14, 31
    %p152 = por %p150, %p151
    %p153 = scmp.ne.s32.totalorder %s142, %s143
    %p154 = scmp.eq.s32.totalorder %s14, 0
    %p155 = por %p153, %p154
    %p156 = scmp.ne.s32.totalorder %s142, %s143
    %p157 = scmp.eq.s32.totalorder %s15, 31
    %p158 = por %p156, %p157
    %p160 = scmp.ne.s32.totalorder %s143, %s159
    %p161 = scmp.eq.s32.totalorder %s15, 0
    %p162 = por %p160, %p161
    %p163 = scmp.le.s32.totalorder 1, %s9
    %p164 = scmp.lt.s32.totalorder %s9, 33
    %p165 = pnand %p163, %p164
    %p166 = pneg %p165
    // Predicated region
    $region9: #{tpu_custom_call.1} parent=5 // pred_check
      _
    $region10: #{tpu_custom_call.1} parent=5 // pred_check_branch
      %168 = sbr.rel (%p165) target = $region12
    $region11: #{tpu_custom_call.1} parent=5 // pred_region
      %s169 = ssub.s32 %s9, 1
    $region12: #{tpu_custom_call.1} parent=5 // pred_fallthru
      _
    %p170 = scmp.lt.s32.totalorder %s9, 32
    // Predicated region
    $region13: #{tpu_custom_call.1} parent=5 // pred_check
      %p171 = pneg %p170
    $region14: #{tpu_custom_call.1} parent=5 // pred_check_branch
      %173 = sbr.rel (%p171) target = $region16
    $region15: #{tpu_custom_call.1} parent=5 // pred_region
      // Predicated region
      $region17: #{tpu_custom_call.1} parent=15 // pred_check
        %p174 = pneg %p59
      $region18: #{tpu_custom_call.1} parent=15 // pred_check_branch
        %176 = sbr.rel (%p174) target = $region20
      $region19: #{tpu_custom_call.1} parent=15 // pred_region
        %p177 = scmp.lt.s32.totalorder %s16, 1
        %s178 = scalar_select %p177, %s16, 1
        %p179 = scmp.lt.s32.totalorder %s17, 3
        %s180 = scalar_select %p179, %s17, 3
        %p181 = scmp.lt.s32.totalorder %s18, 1
        %s182 = scalar_select %p181, %s18, 1
        %s183 = smul.addr %s180, 2
        %s184 = sadd.s32 %s182, %s183
        %s185 = smul.addr %s178, 8
        %s186 = sadd.s32 %s184, %s185
        %s187 = smul.addr %s186, 4
        %s188 = scalar_lea.vmem %s0, %s187
      $region20: #{tpu_custom_call.1} parent=15 // pred_fallthru
        _
      // Predicated region
      $region21: #{tpu_custom_call.1} parent=15 // pred_check
        %p189 = pneg %p89
      $region22: #{tpu_custom_call.1} parent=15 // pred_check_branch
        %191 = sbr.rel (%p189) target = $region24
      $region23: #{tpu_custom_call.1} parent=15 // pred_region
        %p192 = scmp.lt.s32.totalorder %s16, 1
        %s193 = scalar_select %p192, %s16, 1
        %p194 = scmp.lt.s32.totalorder %s17, 3
        %s195 = scalar_select %p194, %s17, 3
        %p196 = scmp.lt.s32.totalorder %s19, 1
        %s197 = scalar_select %p196, %s19, 1
        %s198 = smul.addr %s195, 2
        %s199 = sadd.s32 %s197, %s198
        %s200 = smul.addr %s193, 8
        %s201 = sadd.s32 %s199, %s200
        %s202 = smul.addr %s201, 4
        %s203 = scalar_lea.vmem %s1, %s202
      $region24: #{tpu_custom_call.1} parent=15 // pred_fallthru
        _
      // Predicated region
      $region25: #{tpu_custom_call.1} parent=15 // pred_check
        %p204 = pneg %p119
      $region26: #{tpu_custom_call.1} parent=15 // pred_check_branch
        %206 = sbr.rel (%p204) target = $region28
      $region27: #{tpu_custom_call.1} parent=15 // pred_region
        %p207 = scmp.lt.s32.totalorder %s16, 1
        %s208 = scalar_select %p207, %s16, 1
        %p209 = scmp.lt.s32.totalorder %s17, 3
        %s210 = scalar_select %p209, %s17, 3
        %p211 = scmp.lt.s32.totalorder %s19, 1
        %s212 = scalar_select %p211, %s19, 1
        %s213 = smul.addr %s210, 2
        %s214 = sadd.s32 %s212, %s213
        %s215 = smul.addr %s208, 8
        %s216 = sadd.s32 %s214, %s215
        %s217 = smul.addr %s216, 4
        %s218 = scalar_lea.vmem %s2, %s217
      $region28: #{tpu_custom_call.1} parent=15 // pred_fallthru
        _
    $region16: #{tpu_custom_call.1} parent=5 // pred_fallthru
      _
    %p219 = scmp.le.s32.totalorder 1, %s9
    %p220 = scmp.lt.s32.totalorder %s9, 33
    %p221 = pnand %p219, %p220
    %p222 = pneg %p221
    // Predicated region
    $region29: #{tpu_custom_call.1} parent=5 // pred_check
      _
    $region30: #{tpu_custom_call.1} parent=5 // pred_check_branch
      %224 = sbr.rel (%p221) target = $region32
    $region31: #{tpu_custom_call.1} parent=5 // pred_region
      %s225 = ssub.s32 %s9, 1
      %p226 = scmp.lt.s32.totalorder %s20, 1
      %s227 = scalar_select %p226, %s20, 1
      %p228 = scmp.lt.s32.totalorder %s21, 3
      %s229 = scalar_select %p228, %s21, 3
      %p230 = scmp.lt.s32.totalorder %s22, 1
      %s231 = scalar_select %p230, %s22, 1
      %s232 = smul.addr %s229, 2
      %s233 = sadd.s32 %s231, %s232
      %s234 = smul.addr %s227, 8
      %s235 = sadd.s32 %s233, %s234
      %s236 = smul.addr %s235, 4
      %s237 = scalar_lea.vmem %s0, %s236
      %p238 = pneg %p65
      %p239 = pneg %p62
      %p240 = scmp.lt.s32.totalorder %s20, 1
      %s241 = scalar_select %p240, %s20, 1
      %p242 = scmp.lt.s32.totalorder %s21, 3
      %s243 = scalar_select %p242, %s21, 3
      %p244 = scmp.lt.s32.totalorder %s23, 1
      %s245 = scalar_select %p244, %s23, 1
      %s246 = smul.addr %s243, 2
      %s247 = sadd.s32 %s245, %s246
      %s248 = smul.addr %s241, 8
      %s249 = sadd.s32 %s247, %s248
      %s250 = smul.addr %s249, 4
      %s251 = scalar_lea.vmem %s1, %s250
      %p252 = pneg %p95
      %p253 = pneg %p92
      %p254 = scmp.lt.s32.totalorder %s20, 1
      %s255 = scalar_select %p254, %s20, 1
      %p256 = scmp.lt.s32.totalorder %s21, 3
      %s257 = scalar_select %p256, %s21, 3
      %p258 = scmp.lt.s32.totalorder %s23, 1
      %s259 = scalar_select %p258, %s23, 1
      %s260 = smul.addr %s257, 2
      %s261 = sadd.s32 %s259, %s260
      %s262 = smul.addr %s255, 8
      %s263 = sadd.s32 %s261, %s262
      %s264 = smul.addr %s263, 4
      %s265 = scalar_lea.vmem %s2, %s264
      %p266 = pneg %p125
      %p267 = pneg %p122
      %p268 = pneg %p155
      %p269 = pneg %p152
      %p270 = scmp.lt.s32.totalorder %s20, 1
      %s271 = scalar_select %p270, %s20, 1
      %p272 = scmp.lt.s32.totalorder %s21, 3
      %s273 = scalar_select %p272, %s21, 3
      %p274 = scmp.lt.s32.totalorder %s22, 1
      %s275 = scalar_select %p274, %s22, 1
      %s276 = smul.addr %s273, 2
      %s277 = sadd.s32 %s275, %s276
      %s278 = smul.addr %s271, 8
      %s279 = sadd.s32 %s277, %s278
      %s280 = smul.addr %s279, 8
      %s281 = scalar_lea.vmem %s3, %s280
      %p282 = scmp.lt.s32.totalorder %s20, 1
      %s283 = scalar_select %p282, %s20, 1
      %p284 = scmp.lt.s32.totalorder %s21, 3
      %s285 = scalar_select %p284, %s21, 3
      %p286 = scmp.lt.s32.totalorder %s22, 1
      %s287 = scalar_select %p286, %s22, 1
      %s288 = smul.addr %s285, 2
      %s289 = sadd.s32 %s287, %s288
      %s290 = smul.addr %s283, 8
      %s291 = sadd.s32 %s289, %s290
      %s292 = smul.addr %s291, 4
      %s293 = scalar_lea.vmem %s0, %s292
      %p294 = scmp.lt.s32.totalorder %s20, 1
      %s295 = scalar_select %p294, %s20, 1
      %p296 = scmp.lt.s32.totalorder %s21, 3
      %s297 = scalar_select %p296, %s21, 3
      %p298 = scmp.lt.s32.totalorder %s23, 1
      %s299 = scalar_select %p298, %s23, 1
      %s300 = smul.addr %s297, 2
      %s301 = sadd.s32 %s299, %s300
      %s302 = smul.addr %s295, 8
      %s303 = sadd.s32 %s301, %s302
      %s304 = smul.addr %s303, 4
      %s305 = scalar_lea.vmem %s1, %s304
      %p306 = scmp.lt.s32.totalorder %s20, 1
      %s307 = scalar_select %p306, %s20, 1
      %p308 = scmp.lt.s32.totalorder %s21, 3
      %s309 = scalar_select %p308, %s21, 3
      %p310 = scmp.lt.s32.totalorder %s23, 1
      %s311 = scalar_select %p310, %s23, 1
      %s312 = smul.addr %s309, 2
      %s313 = sadd.s32 %s311, %s312
      %s314 = smul.addr %s307, 8
      %s315 = sadd.s32 %s313, %s314
      %s316 = smul.addr %s315, 4
      %s317 = scalar_lea.vmem %s2, %s316
      %p318 = scmp.lt.s32.totalorder %s20, 1
      %s319 = scalar_select %p318, %s20, 1
      %p320 = scmp.lt.s32.totalorder %s21, 3
      %s321 = scalar_select %p320, %s21, 3
      %p322 = scmp.lt.s32.totalorder %s22, 1
      %s323 = scalar_select %p322, %s22, 1
      %s324 = smul.addr %s321, 2
      %s325 = sadd.s32 %s323, %s324
      %s326 = smul.addr %s319, 8
      %s327 = sadd.s32 %s325, %s326
      %s328 = smul.addr %s327, 8
      %s329 = scalar_lea.vmem %s3, %s328
      %p331 = scmp.eq.s32.totalorder %s23, 0
      // Predicated region
      $region33: #{tpu_custom_call.1} parent=31 // pred_check
        %p332 = pneg %p331
      $region34: #{tpu_custom_call.1} parent=31 // pred_check_branch
        %334 = sbr.rel (%p332) target = $region36
      $region35: #{tpu_custom_call.1} parent=31 // pred_region
        %vm335 = vcmask 7168
        %336 = vst.msk [vmem:[#allocation2] sm:$0xff] %vm335, -inf
        %337 = vst.msk [vmem:[#allocation3] sm:$0xff] %vm335, 0.0
        %vm338 = vcmask 64512
        %339 = vst.msk [vmem:[#allocation4] sm:$0xff] %vm338, 0.0
      $region36: #{tpu_custom_call.1} parent=31 // pred_fallthru
        _
      %v340 = vld [vmem:[%s293] sm:$0xf]
      %v341 = vld [vmem:[%s305] sm:$0xf]
      %v342 = vld [vmem:[%s317] sm:$0xf]
      %vm343 = vcmask 64512
      %v345 = vsel %vm343, %v340, 0
      %v348 = vsel %vm343, %v341, 0
      %350 = vmatpush.bf16.xpose.msra.mxu0 0
      %351 = vmatpush.bf16.xpose.msra.mxu0 0
      %352 = vmatpush.bf16.xpose.msra.mxu0 0
      %353 = vmatpush.bf16.xpose.msra.mxu0 0
      %354 = vmatpush.bf16.xpose.msra.mxu0 0
      %355 = vmatpush.bf16.xpose.msra.mxu0 0
      %356 = vmatpush.bf16.xpose.msra.mxu0 0
      %357 = vmatpush.bf16.xpose.msra.mxu0 %v348
      %358 = vmatmul.bf16.gmra.mxu0 %v345
      %v359 = vpop.f32.mrf.mxu0
      %v360 = vadd.f32 0.0, %v359
      %v361 = vpop.f32.mrf.mxu0
      %362 = vdwg.mxu0
      %v363 = vld [vmem:[#allocation2] sm:$0xff]
      %v364 = vsel %vm343, %v360, -inf
      %365 = vmax.xlane.f32.xlu0 %v364
      %v366 = vpop.xlane.xlu0 %365
      %v367 = vmax.f32 %v363, %v366
      %v368 = vsub.f32 %v363, %v367
      %v369 = vmul.f32 %v368, 1.442695
      %v370 = vpow.pop %v369
      %372 = vset.pattern.permute.xlu0 0
      %373 = vperm.xlu0 %372, %v367
      %v374 = vpop.permute.xlu0 %373
      %v376 = vsub.f32 %v360, %v374
      %v377 = vpack.c.bf16 %v376, %v376
      %v378 = vunpack.c.l.bf16 %v377
      %v379 = vmul.f32 %v378, 1.442695
      %v380 = vpow.pop %v379
      %v381 = vpack.c.bf16 %v380, %v380
      %v382 = vld [vmem:[#allocation3] sm:$0xff]
      %v383 = vmul.f32 %v370, %v382
      %v384 = vunpack.c.l.bf16 %v381
      %v385 = vsel %vm343, %v384, 0.0
      %386 = vadd.xlane.f32.xlu0 %v385
      %v387 = vpop.xlane.xlu0 %386
      %v388 = vadd.f32 %v383, %v387
      %vm389 = vcmask 7168
      %390 = vst.msk [vmem:[#allocation3] sm:$0xff] %vm389, %v388
      %v392 = vsel %vm343, %v381, 0
      %vm394 = vcmask 1043456
      %v396 = vsel %vm394, %v342, 0
      %398 = vmatpush.bf16.msra.mxu0 0
      %399 = vmatpush.bf16.msra.mxu0 0
      %400 = vmatpush.bf16.msra.mxu0 0
      %401 = vmatpush.bf16.msra.mxu0 0
      %402 = vmatpush.bf16.msra.mxu0 0
      %403 = vmatpush.bf16.msra.mxu0 0
      %404 = vmatpush.bf16.msra.mxu0 0
      %405 = vmatpush.bf16.msra.mxu0 %v396
      %406 = vmatmul.bf16.gmra.mxu0 %v392
      %v407 = vpop.f32.mrf.mxu0
      %v408 = vadd.f32 0.0, %v407
      %v409 = vpop.f32.mrf.mxu0
      %410 = vdwg.mxu0
      %v411 = vld [vmem:[#allocation4] sm:$0xff]
      %413 = vset.pattern.permute.xlu0 0
      %414 = vperm.xlu0 %413, %v370
      %v415 = vpop.permute.xlu0 %414
      %v417 = vmul.f32 %v415, %v411
      %v418 = vadd.f32 %v417, %v408
      %419 = vst.msk [vmem:[#allocation4] sm:$0xff] %vm343, %v418
      %420 = vst.msk [vmem:[#allocation2] sm:$0xff] %vm389, %v367
      %p421 = scmp.eq.s32.totalorder %s23, 1
      // Predicated region
      $region37: #{tpu_custom_call.1} parent=31 // pred_check
        %p422 = pneg %p421
      $region38: #{tpu_custom_call.1} parent=31 // pred_check_branch
        %424 = sbr.rel (%p422) target = $region40
      $region39: #{tpu_custom_call.1} parent=31 // pred_region
        %v425 = vld [vmem:[#allocation4] sm:$0xff]
        %v426 = vld [vmem:[#allocation3] sm:$0xff]
        %v427 = vrcp.pop %v426
        %429 = vset.pattern.permute.xlu0 0
        %430 = vperm.xlu0 %429, %v427
        %v431 = vpop.permute.xlu0 %430
        %v433 = vmul.f32 %v425, %v431
        %434 = vst.msk [vmem:[%s329] sm:$0xff] %vm343, %v433
      $region40: #{tpu_custom_call.1} parent=31 // pred_fallthru
        _
      %p435 = scmp.lt.s32.totalorder %s20, 1
      %s436 = scalar_select %p435, %s20, 1
      %p437 = scmp.lt.s32.totalorder %s21, 3
      %s438 = scalar_select %p437, %s21, 3
      %p439 = scmp.lt.s32.totalorder %s22, 1
      %s440 = scalar_select %p439, %s22, 1
      %s441 = smul.addr %s438, 2
      %s442 = sadd.s32 %s440, %s441
      %s443 = smul.addr %s436, 8
      %s444 = sadd.s32 %s442, %s443
      %s445 = smul.addr %s444, 8
      %s446 = scalar_lea.vmem %s3, %s445
      // Predicated region
      $region41: #{tpu_custom_call.1} parent=31 // pred_check
        %p447 = pneg %p152
      $region42: #{tpu_custom_call.1} parent=31 // pred_check_branch
        %449 = sbr.rel (%p447) target = $region44
      $region43: #{tpu_custom_call.1} parent=31 // pred_region
        _
      $region44: #{tpu_custom_call.1} parent=31 // pred_fallthru
        _
    $region32: #{tpu_custom_call.1} parent=5 // pred_fallthru
      _
    %p450 = scmp.le.s32.totalorder 2, %s9
    // Predicated region
    $region45: #{tpu_custom_call.1} parent=5 // pred_check
      %p451 = pneg %p450
    $region46: #{tpu_custom_call.1} parent=5 // pred_check_branch
      %453 = sbr.rel (%p451) target = $region48
    $region47: #{tpu_custom_call.1} parent=5 // pred_region
      %s454 = ssub.s32 %s9, 2
      // Predicated region
      $region49: #{tpu_custom_call.1} parent=47 // pred_check
        %p455 = pneg %p158
      $region50: #{tpu_custom_call.1} parent=47 // pred_check_branch
        %457 = sbr.rel (%p455) target = $region52
      $region51: #{tpu_custom_call.1} parent=47 // pred_region
        %p458 = scmp.lt.s32.totalorder %s24, 1
        %s459 = scalar_select %p458, %s24, 1
        %p460 = scmp.lt.s32.totalorder %s25, 3
        %s461 = scalar_select %p460, %s25, 3
        %p462 = scmp.lt.s32.totalorder %s26, 1
        %s463 = scalar_select %p462, %s26, 1
        %s464 = smul.addr %s461, 2
        %s465 = sadd.s32 %s463, %s464
        %s466 = smul.addr %s459, 8
        %s467 = sadd.s32 %s465, %s466
        %s468 = smul.addr %s467, 8
        %s469 = scalar_lea.vmem %s3, %s468
      $region52: #{tpu_custom_call.1} parent=47 // pred_fallthru
        _
    $region48: #{tpu_custom_call.1} parent=5 // pred_fallthru
      _
  $region6: #{tpu_custom_call.1} parent=0 // loop_footer
    %s13 = sadd.s32 1, %s9
  $region7: #{tpu_custom_call.1} parent=0 // loop_footer_branch
    %8 = sbr.rel target = $region3
  $region8: #{tpu_custom_call.1} parent=0 // loop_exit
    _

</llo_original>
